<compile_context>
chip_gen: v7x
topology: tpu7x:2x2x1
jax: 0.10.0
libtpu: 0.0.40
codegen_flags: <defaults>
</compile_context>

<pallas_src>
import math

import jax
import jax.numpy as jnp
from jax.experimental import pallas as pl
from jax.experimental.pallas import tpu as pltpu


# ----------------------------------------------------------------------------
# Kernel: one (block_rows, cols) tile of Swish.  Compute in f32 (EUP/VPU have
# huge slack under the DMA), cast back to the output dtype on store.
# ----------------------------------------------------------------------------
def _swish_kernel(x_ref, o_ref):
    x32 = x_ref[...].astype(jnp.float32)
    o_ref[...] = (x32 * jax.nn.sigmoid(x32)).astype(o_ref.dtype)


# ----------------------------------------------------------------------------
# Sizing helpers.
# ----------------------------------------------------------------------------
def _cdiv(a: int, b: int) -> int:
    return (a + b - 1) // b


def _round_up(a: int, b: int) -> int:
    return _cdiv(a, b) * b


def _sublane_multiple(dtype) -> int:
    # Packed min-tile sublane count: (8,128) f32, (16,128) bf16, (32,128) int8/fp8.
    return {4: 8, 2: 16, 1: 32}.get(jnp.dtype(dtype).itemsize, 8)


def _block_budget():
    """(target_block_bytes, vmem_limit_bytes) chosen per TPU generation."""
    try:
        vmem = pltpu.get_tpu_info().vmem_capacity_bytes
    except Exception:
        vmem = 64 * 1024 * 1024  # conservative (v7x-sized) default
    if vmem >= 128 * 1024 * 1024:          # v5e / v6e: 128 MiB VMEM
        return 8 * 1024 * 1024, 64 * 1024 * 1024
    return 4 * 1024 * 1024, 32 * 1024 * 1024   # v7x: 64 MiB VMEM per TC


# Below this element count a single fused XLA elementwise op beats the fixed
# pallas_call + reshape overhead.  (Production setting could be ~64K; kept
# smaller here so the demo shapes exercise the Pallas path.)
_MIN_PALLAS_ELEMENTS = 4096


def _swish_2d(x2, rows: int, cols: int, target_block_bytes: int, vmem_limit: int):
    """Run the Pallas kernel on a lane-dense (rows, cols) slab."""
    dtype = x2.dtype
    itemsize = jnp.dtype(dtype).itemsize
    sublane = _sublane_multiple(dtype)

    # Byte-based block sizing, rounded down to the dtype's sublane packing.
    row_bytes = cols * itemsize
    block_rows = max(sublane, (target_block_bytes // row_bytes) // sublane * sublane)
    # Keep >= 2 grid steps when possible so "parallel" feeds both v7x cores.
    if rows > 2 * sublane:
        block_rows = min(block_rows, _round_up(_cdiv(rows, 2), sublane))
    if block_rows >= rows:
        block_rows = rows  # single block == full array dims (always legal)

    grid = (_cdiv(rows, block_rows),)  # last block may be partial (masked writeback)
    return pl.pallas_call(
        _swish_kernel,
        out_shape=jax.ShapeDtypeStruct((rows, cols), dtype),
        grid_spec=pltpu.PrefetchScalarGridSpec(
            num_scalar_prefetch=0,
            grid=grid,
            in_specs=[pl.BlockSpec((block_rows, cols), lambda i: (i, 0))],
            out_specs=pl.BlockSpec((block_rows, cols), lambda i: (i, 0)),
        ),
        compiler_params=pltpu.CompilerParams(
            dimension_semantics=("parallel",),   # megacore-shardable row axis
            vmem_limit_bytes=vmem_limit,
        ),
    )(x2)


# ----------------------------------------------------------------------------
# Wrapper: Swish / SiLU for any shape and floating dtype.
# ----------------------------------------------------------------------------
def swish(x):
    orig_shape = x.shape
    n = math.prod(orig_shape) if orig_shape else 1

    # Tiny inputs: a fused XLA op is already at roofline.
    if n < _MIN_PALLAS_ELEMENTS:
        x32 = x.astype(jnp.float32)
        return (x32 * jax.nn.sigmoid(x32)).astype(x.dtype)

    target_block_bytes, vmem_limit = _block_budget()
    itemsize = jnp.dtype(x.dtype).itemsize
    sublane = _sublane_multiple(x.dtype)

    last = orig_shape[-1] if len(orig_shape) >= 1 else 1
    lane_aligned = (
        last > 0
        and last % 128 == 0
        and last * itemsize * sublane <= target_block_bytes  # min block still fits
    )

    if lane_aligned:
        # Zero-copy: collapse leading dims into rows, feature dim stays as lanes.
        cols = last
        rows = n // cols
        out2 = _swish_2d(x.reshape(rows, cols), rows, cols, target_block_bytes, vmem_limit)
        return out2.reshape(orig_shape)

    # Fallback: flatten to a 512-lane slab.  Pad is < cols elements (not a
    # block multiple); the row grid handles the partial last block itself.
    cols = 512
    rows = _cdiv(n, cols)
    total = rows * cols
    xf = x.reshape(-1)
    if total != n:
        xf = jnp.pad(xf, (0, total - n))  # swish(0) == 0; padded tail discarded
    out2 = _swish_2d(xf.reshape(rows, cols), rows, cols, target_block_bytes, vmem_limit)
    out = out2.reshape(-1)
    if total != n:
        out = out[:n]
    return out.reshape(orig_shape)


# ----------------------------------------------------------------------------
# Demo / correctness checks.
# ----------------------------------------------------------------------------
if __name__ == "__main__":
    key = jax.random.PRNGKey(0)
    k1, k2, k3, k4 = jax.random.split(key, 4)

    swish_jit = jax.jit(swish)

    def ref_swish(v):
        v32 = v.astype(jnp.float32)
        return (v32 * jax.nn.sigmoid(v32)).astype(v.dtype)

    # 1) Lane-dense zero-copy path (feature dim 256 = 2*128): grid of 2 blocks.
    x1 = jax.random.normal(k1, (2, 16, 256), jnp.float32)
    o1 = jax.block_until_ready(swish_jit(x1))
    assert o1.shape == x1.shape
    assert jnp.allclose(o1, ref_swish(x1), atol=1e-6, rtol=1e-6)

    # 2) Fallback path (trailing dim 77 not lane-aligned -> flatten + tiny pad,
    #    partial last row block).
    x2 = jax.random.normal(k2, (3, 40, 77), jnp.float32)
    o2 = jax.block_until_ready(swish_jit(x2))
    assert o2.shape == x2.shape
    assert jnp.allclose(o2, ref_swish(x2), atol=1e-6, rtol=1e-6)

    # 3) bfloat16: dtype-aware (16,128) sublane packing + f32 compute in kernel.
    x3 = jax.random.normal(k3, (2, 32, 256), jnp.float32).astype(jnp.bfloat16)
    o3 = jax.block_until_ready(swish_jit(x3))
    assert o3.shape == x3.shape and o3.dtype == jnp.bfloat16
    assert jnp.allclose(o3.astype(jnp.float32), ref_swish(x3).astype(jnp.float32),
                        atol=2e-2, rtol=2e-2)

    # 4) Tiny Conformer-sized activation (2, 8, 32): pure-XLA bypass path.
    x4 = jax.random.normal(k4, (2, 8, 32), jnp.float32)
    o4 = jax.block_until_ready(swish_jit(x4))
    assert o4.shape == x4.shape
    assert jnp.allclose(o4, ref_swish(x4), atol=1e-6, rtol=1e-6)

    print("KERNEL_OK")
</pallas_src>

<mosaic_0001>
module attributes {stable_mosaic.version = 11 : i64} {
  func.func @_swish_kernel(%arg0: i32, %arg1: memref<16x256xf32, #tpu.memory_space<vmem>>, %arg2: memref<16x256xf32, #tpu.memory_space<vmem>>) attributes {dimension_semantics = [#tpu.dimension_semantics<parallel>], iteration_bounds = array<i64: 2>, scalar_prefetch = 0 : i64, scratch_operands = 0 : i64, tpu.core_type = #tpu.core_type<tc>, window_params = [{transform_indices = @transform_0, window_bounds = array<i64: 16, 256>}, {transform_indices = @transform_1, window_bounds = array<i64: 16, 256>}]} {
    %c0 = arith.constant 0 : index
    %c0_0 = arith.constant 0 : index
    %0 = vector.load %arg1[%c0, %c0_0] : memref<16x256xf32, #tpu.memory_space<vmem>>, vector<16x256xf32>
    %1 = arith.negf %0 : vector<16x256xf32>
    %2 = math.exp %1 : vector<16x256xf32>
    %cst = arith.constant 1.000000e+00 : f32
    %3 = vector.broadcast %cst : f32 to vector<16x256xf32>
    %4 = arith.addf %3, %2 : vector<16x256xf32>
    %5 = arith.divf %3, %4 : vector<16x256xf32>
    %6 = arith.mulf %0, %5 : vector<16x256xf32>
    %c0_1 = arith.constant 0 : index
    %c0_2 = arith.constant 0 : index
    %7 = vector.load %arg2[%c0_1, %c0_2] : memref<16x256xf32, #tpu.memory_space<vmem>>, vector<16x256xf32>
    tpu.vector_store %arg2[%c0_1, %c0_2], %6 {strides = array<i32>} : memref<16x256xf32, #tpu.memory_space<vmem>>, vector<16x256xf32>,
    return
  }
  func.func @transform_0(%arg0: i32) -> (i32, i32) {
    %c0_i32 = arith.constant 0 : i32
    %c0_i32_0 = arith.constant 0 : i32
    return %arg0, %c0_i32 : i32, i32
  }
  func.func @transform_1(%arg0: i32) -> (i32, i32) {
    %c0_i32 = arith.constant 0 : i32
    %c0_i32_0 = arith.constant 0 : i32
    return %arg0, %c0_i32 : i32, i32
  }
}

</mosaic_0001>

<llo_original>
// kernel: swish.1
$region0: #{swish.1}
  #allocation0 [shape = 'u32[]', space=smem, size = 0x4, offset = 0x4, fixed_abs, tag = 'smem constant byte address 0x4 - core index']
  #allocation1 [shape = 'u32[144,128]{1,0:T(1,128)}', space=vmem, size = 0x12000, scoped, tag = 'internal scratch']
  %s0 = inlined_call_operand.hbm [shape: f32[32,256], index: 0, kind: input, shape index: {}]
  %s1 = inlined_call_operand.hbm [shape: f32[32,256], index: 1, kind: output, shape index: {}]
  %s2 = sld [smem:[#allocation0]]
  $region41: #{swish.1} parent=0
    _
  %s4 = ssub.s32 1, %s2
  %s5 = scalar_select 0, %s4, %s2
  $region1: #{swish.1} parent=0
    #allocation2 [shape = 'u8[32768]{0}', space=vmem, size = 0x8000, scoped, tag = 'input window, operand 0']
    #allocation3 [shape = 's32[2]{0}', space=sflag, size = 0x8, scoped, tag = 'scoped memory for swish.1']
    #allocation4 [shape = 's32[2]{0}', space=sflag, size = 0x8, scoped, tag = 'scoped memory for swish.1']
    #allocation5 [shape = 'u8[32768]{0}', space=vmem, size = 0x8000, scoped, tag = 'output window, operand 0']
    %6 = vsyncpa [#allocation3], 0
    %s7 = scalar_lea.sflag [#allocation3], 1
    %8 = vsyncpa %s7, 0
    %9 = vsyncpa [#allocation4], 0
    %s10 = scalar_lea.sflag [#allocation4], 1
    %11 = vsyncpa %s10, 0
    loop: start=0, step=1, limit=4
    $region2: #{swish.1} parent=1 // loop_pre_header
      _
    $region3: #{swish.1} parent=1 // loop_header
      %s13 = sphi 0, %s17
      %p14 = scmp.ge.s32.totalorder %s13, 4
      %s23 = sphi 0, %s25
      %s26 = sphi 0, %s23
      %s27 = sphi 0, %s26
      %s43 = sphi 0, %s27
      %s49 = sphi 0, %s51
      %s52 = sphi 0, %s49
      %s53 = sphi 0, %s52
      %s69 = sphi 0, %s53
    $region4: #{swish.1} parent=1 // loop_header_branch
      %16 = sbr.rel (%p14) target = $region8
    $region5: #{swish.1} parent=1 // loop_body
      %s18 = ssub.s32 %s13, 1
      %s19 = ssub.s32 %s13, 2
      %s20 = sadd.s32 %s13, 1
      %s21 = ssub.s32 %s13, %s20
      %p22 = scmp.eq.s32.totalorder %s21, 0
      %s24 = sadd.s32 %s23, 1
      %s25 = scalar_select %p22, %s23, %s24
      %p28 = pneg %p22
      %p29 = scmp.eq.s32.totalorder %s13, 1
      %p30 = por %p28, %p29
      %p31 = scmp.ne.s32.totalorder %s23, %s26
      %p32 = scmp.eq.s32.totalorder %s13, 0
      %p33 = por %p31, %p32
      %p34 = scmp.ne.s32.totalorder %s23, %s26
      %p35 = scmp.eq.s32.totalorder %s18, 1
      %p36 = por %p34, %p35
      %p37 = scmp.ne.s32.totalorder %s26, %s27
      %p38 = scmp.eq.s32.totalorder %s18, 0
      %p39 = por %p37, %p38
      %p40 = scmp.ne.s32.totalorder %s26, %s27
      %p41 = scmp.eq.s32.totalorder %s19, 1
      %p42 = por %p40, %p41
      %p44 = scmp.ne.s32.totalorder %s27, %s43
      %p45 = scmp.eq.s32.totalorder %s19, 0
      %p46 = por %p44, %p45
      %s47 = ssub.s32 %s13, %s20
      %p48 = scmp.eq.s32.totalorder %s47, 0
      %s50 = sadd.s32 %s49, 1
      %s51 = scalar_select %p48, %s49, %s50
      %p54 = pneg %p48
      %p55 = scmp.eq.s32.totalorder %s13, 1
      %p56 = por %p54, %p55
      %p57 = scmp.ne.s32.totalorder %s49, %s52
      %p58 = scmp.eq.s32.totalorder %s13, 0
      %p59 = por %p57, %p58
      %p60 = scmp.ne.s32.totalorder %s49, %s52
      %p61 = scmp.eq.s32.totalorder %s18, 1
      %p62 = por %p60, %p61
      %p63 = scmp.ne.s32.totalorder %s52, %s53
      %p64 = scmp.eq.s32.totalorder %s18, 0
      %p65 = por %p63, %p64
      %p66 = scmp.ne.s32.totalorder %s52, %s53
      %p67 = scmp.eq.s32.totalorder %s19, 1
      %p68 = por %p66, %p67
      %p70 = scmp.ne.s32.totalorder %s53, %s69
      %p71 = scmp.eq.s32.totalorder %s19, 0
      %p72 = por %p70, %p71
      %p73 = scmp.le.s32.totalorder 1, %s13
      %p74 = scmp.lt.s32.totalorder %s13, 3
      %p75 = pnand %p73, %p74
      %p76 = pneg %p75
      // Predicated region
      $region9: #{swish.1} parent=5 // pred_check
        _
      $region10: #{swish.1} parent=5 // pred_check_branch
        %78 = sbr.rel (%p75) target = $region12
      $region11: #{swish.1} parent=5 // pred_region
        %s79 = ssub.s32 %s13, 1
      $region12: #{swish.1} parent=5 // pred_fallthru
        _
      %p80 = scmp.lt.s32.totalorder %s13, 2
      // Predicated region
      $region13: #{swish.1} parent=5 // pred_check
        %p81 = pneg %p80
      $region14: #{swish.1} parent=5 // pred_check_branch
        %83 = sbr.rel (%p81) target = $region16
      $region15: #{swish.1} parent=5 // pred_region
        // Predicated region
        $region17: #{swish.1} parent=15 // pred_check
          %p84 = pneg %p33
        $region18: #{swish.1} parent=15 // pred_check_branch
          %86 = sbr.rel (%p84) target = $region20
        $region19: #{swish.1} parent=15 // pred_region
          %s87 = sand.u32 %s23, 1
          %s88 = scalar_lea.sflag [#allocation3], %s87
          %s89 = sand.u32 %s23, 1
          %s90 = smul.addr %s89, 32
          %s91 = scalar_lea.vmem [#allocation2], %s90
          %s92 = smul.u32 2, %s13
          %s94 = ssub.s32 512, 512
          %95 = vsyncadd %s88, %s94
          %s96 = smul.addr %s92, 2
          %s97 = smul.addr %s96, 128
          %s98 = scalar_lea.hbm %s0, %s97
          %s99 = sshll.u32 %s91, 4
          %s100 = int_to_ptr.vmem [resolvable:$true] %s99
          %105 = dma.hbm_to_vmem [thread:$0]  %s98, 512, %s100, %s88, 256, 256, 16
        $region20: #{swish.1} parent=15 // pred_fallthru
          _
      $region16: #{swish.1} parent=5 // pred_fallthru
        _
      %p106 = scmp.le.s32.totalorder 1, %s13
      %p107 = scmp.lt.s32.totalorder %s13, 3
      %p108 = pnand %p106, %p107
      %p109 = pneg %p108
      // Predicated region
      $region21: #{swish.1} parent=5 // pred_check
        _
      $region22: #{swish.1} parent=5 // pred_check_branch
        %111 = sbr.rel (%p108) target = $region24
      $region23: #{swish.1} parent=5 // pred_region
        %s112 = ssub.s32 %s13, 1
        %s113 = sand.u32 %s26, 1
        %s114 = scalar_lea.sflag [#allocation3], %s113
        %s115 = sand.u32 %s26, 1
        %s116 = smul.addr %s115, 32
        %s117 = scalar_lea.vmem [#allocation2], %s116
        // Predicated region
        $region25: #{swish.1} parent=23 // pred_check
          %p118 = pneg %p39
        $region26: #{swish.1} parent=23 // pred_check_branch
          %120 = sbr.rel (%p118) target = $region28
        $region27: #{swish.1} parent=23 // pred_region
          %121 = dma.done %s114, 512
        $region28: #{swish.1} parent=23 // pred_fallthru
          _
        %s122 = sand.u32 %s26, 1
        %s123 = scalar_lea.sflag [#allocation3], %s122
        %s124 = sand.u32 %s26, 1
        %s125 = smul.addr %s124, 32
        %s126 = scalar_lea.vmem [#allocation2], %s125
        %p127 = pneg %p39
        %p128 = pneg %p36
        %p129 = pneg %p65
        %p130 = pneg %p62
        %s131 = sand.u32 %s52, 1
        %s132 = scalar_lea.sflag [#allocation4], %s131
        %s133 = sand.u32 %s52, 1
        %s134 = smul.addr %s133, 32
        %s135 = scalar_lea.vmem [#allocation5], %s134
        %s136 = smul.u32 2, %s18
        %s137 = smul.u32 2, %s18
        %v138 = vld [vmem:[%s117] sm:$0xff]
        %v139 = vld [vmem:[%s117 + $0x8] sm:$0xff]
        %v140 = vld [vmem:[%s117 + $0x10] sm:$0xff]
        %v141 = vld [vmem:[%s117 + $0x18] sm:$0xff]
        %v142 = vxor.u32 %v138, 2147483648
        %v143 = vxor.u32 %v139, 2147483648
        %v144 = vxor.u32 %v140, 2147483648
        %v145 = vxor.u32 %v141, 2147483648
        %v146 = vmul.f32 %v142, 1.442695
        %v147 = vpow.pop %v146
        %v148 = vmul.f32 %v143, 1.442695
        %v149 = vpow.pop %v148
        %v150 = vmul.f32 %v144, 1.442695
        %v151 = vpow.pop %v150
        %v152 = vmul.f32 %v145, 1.442695
        %v153 = vpow.pop %v152
        %v154 = vadd.f32 %v147, 1.0
        %v155 = vadd.f32 %v149, 1.0
        %v156 = vadd.f32 %v151, 1.0
        %v157 = vadd.f32 %v153, 1.0
        %v158 = vrcp.pop %v154
        %v159 = vmul.f32 1.0, %v158
        %v160 = vrcp.pop %v155
        %v161 = vmul.f32 1.0, %v160
        %v162 = vrcp.pop %v156
        %v163 = vmul.f32 1.0, %v162
        %v164 = vrcp.pop %v157
        %v165 = vmul.f32 1.0, %v164
        %v166 = vmul.f32 %v138, %v159
        %v167 = vmul.f32 %v139, %v161
        %v168 = vmul.f32 %v140, %v163
        %v169 = vmul.f32 %v141, %v165
        %170 = vst [vmem:[%s135] sm:$0xff] %v166
        %171 = vst [vmem:[%s135 + $0x8] sm:$0xff] %v167
        %172 = vst [vmem:[%s135 + $0x10] sm:$0xff] %v168
        %173 = vst [vmem:[%s135 + $0x18] sm:$0xff] %v169
        %s174 = sand.u32 %s52, 1
        %s175 = scalar_lea.sflag [#allocation4], %s174
        %s176 = sand.u32 %s52, 1
        %s177 = smul.addr %s176, 32
        %s178 = scalar_lea.vmem [#allocation5], %s177
        // Predicated region
        $region29: #{swish.1} parent=23 // pred_check
          %p179 = pneg %p62
        $region30: #{swish.1} parent=23 // pred_check_branch
          %181 = sbr.rel (%p179) target = $region32
        $region31: #{swish.1} parent=23 // pred_region
          %s182 = smul.u32 2, %s18
          %s184 = ssub.s32 512, 512
          %185 = vsyncadd %s175, %s184
          %s186 = smul.addr %s182, 2
          %s187 = smul.addr %s186, 128
          %s188 = scalar_lea.hbm %s1, %s187
          %s189 = sshll.u32 %s178, 4
          %s190 = int_to_ptr.vmem [resolvable:$true] %s189
          %195 = dma.vmem_to_hbm [thread:$0]  %s190, 512, %s188, %s175, 256, 256, 16
        $region32: #{swish.1} parent=23 // pred_fallthru
          _
      $region24: #{swish.1} parent=5 // pred_fallthru
        _
      %p196 = scmp.le.s32.totalorder 2, %s13
      // Predicated region
      $region33: #{swish.1} parent=5 // pred_check
        %p197 = pneg %p196
      $region34: #{swish.1} parent=5 // pred_check_branch
        %199 = sbr.rel (%p197) target = $region36
      $region35: #{swish.1} parent=5 // pred_region
        %s200 = ssub.s32 %s13, 2
        // Predicated region
        $region37: #{swish.1} parent=35 // pred_check
          %p201 = pneg %p68
        $region38: #{swish.1} parent=35 // pred_check_branch
          %203 = sbr.rel (%p201) target = $region40
        $region39: #{swish.1} parent=35 // pred_region
          %s204 = sand.u32 %s53, 1
          %s205 = scalar_lea.sflag [#allocation4], %s204
          %s206 = sand.u32 %s53, 1
          %s207 = smul.addr %s206, 32
          %s208 = scalar_lea.vmem [#allocation5], %s207
          %209 = dma.done %s205, 512
        $region40: #{swish.1} parent=35 // pred_fallthru
          _
      $region36: #{swish.1} parent=5 // pred_fallthru
        _
    $region6: #{swish.1} parent=1 // loop_footer
      %s17 = sadd.s32 1, %s13
    $region7: #{swish.1} parent=1 // loop_footer_branch
      %12 = sbr.rel target = $region3
    $region8: #{swish.1} parent=1 // loop_exit
      _
    %210 = vsyncpa [#allocation3], 1
    %s211 = scalar_lea.sflag [#allocation3], 1
    %212 = vsyncpa %s211, 1
    %213 = vsyncpa [#allocation4], 1
    %s214 = scalar_lea.sflag [#allocation4], 1
    %215 = vsyncpa %s214, 1

</llo_original>
